<compile_context>
chip_gen: v5e
topology: v5e:2x2
jax: 0.10.0
libtpu: 0.0.40
codegen_flags: <defaults>
</compile_context>

<pallas_src>
import jax
import jax.numpy as jnp
from jax.experimental import pallas as pl
from jax.experimental.pallas import tpu as pltpu

LANE = 128  # lane-dense padding target for hidden / class dims


def mlp_kernel(x_ref,
               w1_ref, b1_ref, w2_ref, b2_ref, w3_ref, b3_ref, w4_ref, b4_ref,
               o_ref):
    """Full 4-layer forward for one (TB, D_in) bf16 batch tile, resident in VMEM."""

    def hidden_layer(h_bf16, w_ref, b_ref):
        # bf16 MXU matmul, f32 accumulation; bias + ReLU in f32 (v5e-safe),
        # then a single cast back to bf16 for the next layer's input.
        y = jnp.dot(h_bf16, w_ref[...],
                    preferred_element_type=jnp.float32) + b_ref[...]
        return jnp.maximum(y, 0.0).astype(jnp.bfloat16)

    h = hidden_layer(x_ref[...], w1_ref, b1_ref)   # x already bf16 from HBM
    h = hidden_layer(h, w2_ref, b2_ref)
    h = hidden_layer(h, w3_ref, b3_ref)
    # Final layer: no ReLU, store f32 logits (lane-dense 128-wide slab).
    o_ref[...] = jnp.dot(h, w4_ref[...],
                         preferred_element_type=jnp.float32) + b4_ref[...]


def _pad2(a, rows, cols, dtype):
    """Zero-pad a 2D array to (rows, cols) and cast."""
    r, c = a.shape
    return jnp.pad(a, ((0, rows - r), (0, cols - c))).astype(dtype)


def _round_up(x, m):
    return ((x + m - 1) // m) * m


def model5_forward(x, params, *, tb=None):
    """x: any shape whose trailing dims flatten to img_h*img_w (e.g. (B,1,H,W))."""
    d_in = params["w1"].shape[0]
    n_classes = params["w4"].shape[1]
    x2d = x.reshape(-1, d_in)              # glue: view(-1, H*W); cast fused below
    B = x2d.shape[0]

    # Batch tile: big tiles amortize the ~0.35 us per-grid-step overhead on this
    # mem-bound kernel; aim for >= 2 tiles when possible (v7x 2-TC sharding).
    if tb is None:
        if B <= 256:
            tb = 128
        elif B <= 2048:
            tb = min(1024, _round_up(pl.cdiv(B, 2), 128))   # ~2 tiles
        else:
            tb = 1024
    n_tiles = pl.cdiv(B, tb)
    Bp = n_tiles * tb

    # Single fused reshape+cast(+pad): only one bf16 copy of x is materialized.
    if Bp != B:
        x_pad = jnp.pad(x2d.astype(jnp.bfloat16), ((0, Bp - B), (0, 0)))
    else:
        x_pad = x2d.astype(jnp.bfloat16)

    # Pack weights: (in, out) layout, zero-padded to lane-dense widths, bf16.
    # Padded hidden columns get 0 pre-activation (bias pad = 0), ReLU(0)=0, and
    # the matching zero rows of the next weight contribute nothing -> exact.
    hp = LANE                                              # hidden 32 -> 128
    cp = max(LANE, _round_up(n_classes, LANE))             # classes -> 128
    w1 = _pad2(params["w1"], d_in, hp, jnp.bfloat16)
    w2 = _pad2(params["w2"], hp, hp, jnp.bfloat16)
    w3 = _pad2(params["w3"], hp, hp, jnp.bfloat16)
    w4 = _pad2(params["w4"], hp, cp, jnp.bfloat16)
    b1 = _pad2(params["b1"].reshape(1, -1), 1, hp, jnp.float32)
    b2 = _pad2(params["b2"].reshape(1, -1), 1, hp, jnp.float32)
    b3 = _pad2(params["b3"].reshape(1, -1), 1, hp, jnp.float32)
    b4 = _pad2(params["b4"].reshape(1, -1), 1, cp, jnp.float32)

    x_spec = pl.BlockSpec((tb, d_in), lambda i: (i, 0))
    # Constant index_map -> blocks stay resident; no extra buffering depth added.
    const = lambda shape: pl.BlockSpec(shape, lambda i: (0, 0))
    out_spec = pl.BlockSpec((tb, cp), lambda i: (i, 0))

    out_pad = pl.pallas_call(
        mlp_kernel,
        out_shape=jax.ShapeDtypeStruct((Bp, cp), jnp.float32),
        grid=(n_tiles,),
        in_specs=[
            x_spec,
            const(w1.shape), const(b1.shape),
            const(w2.shape), const(b2.shape),
            const(w3.shape), const(b3.shape),
            const(w4.shape), const(b4.shape),
        ],
        out_specs=out_spec,
        compiler_params=pltpu.CompilerParams(
            dimension_semantics=("parallel",)),
    )(x_pad, w1, b1, w2, b2, w3, b3, w4, b4)

    return out_pad[:B, :n_classes]


def init_params(key, img_h, img_w, n_classes):
    """Deterministic init mimicking nn.Linear defaults: U(-1/sqrt(fan_in), +)."""
    dims = [img_h * img_w, 32, 32, 32, n_classes]
    params = {}
    keys = jax.random.split(key, 2 * (len(dims) - 1))
    for li in range(1, len(dims)):
        fan_in, fan_out = dims[li - 1], dims[li]
        bound = 1.0 / (fan_in ** 0.5)
        kw, kb = keys[2 * (li - 1)], keys[2 * (li - 1) + 1]
        # stored as (in, out) == PyTorch weight.T
        params[f"w{li}"] = jax.random.uniform(
            kw, (fan_in, fan_out), jnp.float32, -bound, bound)
        params[f"b{li}"] = jax.random.uniform(
            kb, (fan_out,), jnp.float32, -bound, bound)
    return params


def reference_forward(x, params):
    """Pure-JAX reference emulating the kernel's bf16-stream / f32-accumulate path."""
    h = x.reshape(-1, params["w1"].shape[0]).astype(jnp.bfloat16)
    for li in range(1, 5):
        w = params[f"w{li}"].astype(jnp.bfloat16)
        y = jnp.dot(h, w, preferred_element_type=jnp.float32) + params[f"b{li}"]
        h = jnp.maximum(y, 0.0).astype(jnp.bfloat16) if li < 4 else y
    return h


def reference_forward_f32(x, params):
    """Pure-f32 reference of the PyTorch forward (loose-tolerance sanity check)."""
    h = x.reshape(-1, params["w1"].shape[0]).astype(jnp.float32)
    for li in range(1, 4):
        h = jnp.maximum(h @ params[f"w{li}"] + params[f"b{li}"], 0.0)
    return h @ params["w4"] + params["b4"]


if __name__ == "__main__":
    img_h, img_w, n_classes = 16, 16, 10
    batch = 2

    key = jax.random.PRNGKey(0)
    kx, kp = jax.random.split(key)
    params = init_params(kp, img_h, img_w, n_classes)
    # input in the PyTorch-style NCHW layout (B, 1, H, W)
    x = jax.random.normal(kx, (batch, 1, img_h, img_w), jnp.float32)

    out = model5_forward(x, params)
    out = jax.block_until_ready(out)

    assert out.shape == (batch, n_classes), out.shape

    ref_bf16 = reference_forward(x, params)
    assert jnp.allclose(out, ref_bf16, atol=2e-3, rtol=2e-3), \
        float(jnp.max(jnp.abs(out - ref_bf16)))

    ref_f32 = reference_forward_f32(x, params)
    assert jnp.allclose(out, ref_f32, atol=1e-1, rtol=1e-1), \
        float(jnp.max(jnp.abs(out - ref_f32)))

    print("KERNEL_OK")
</pallas_src>

<mosaic_0001>
module attributes {stable_mosaic.version = 11 : i64} {
  func.func @mlp_kernel(%arg0: i32, %arg1: memref<128x256xbf16, #tpu.memory_space<vmem>>, %arg2: memref<256x128xbf16, #tpu.memory_space<vmem>>, %arg3: memref<1x128xf32, #tpu.memory_space<vmem>>, %arg4: memref<128x128xbf16, #tpu.memory_space<vmem>>, %arg5: memref<1x128xf32, #tpu.memory_space<vmem>>, %arg6: memref<128x128xbf16, #tpu.memory_space<vmem>>, %arg7: memref<1x128xf32, #tpu.memory_space<vmem>>, %arg8: memref<128x128xbf16, #tpu.memory_space<vmem>>, %arg9: memref<1x128xf32, #tpu.memory_space<vmem>>, %arg10: memref<128x128xf32, #tpu.memory_space<vmem>>) attributes {dimension_semantics = [#tpu.dimension_semantics<parallel>], iteration_bounds = array<i64: 1>, scalar_prefetch = 0 : i64, scratch_operands = 0 : i64, tpu.core_type = #tpu.core_type<tc>, window_params = [{transform_indices = @transform_0, window_bounds = array<i64: 128, 256>}, {pipeline_mode = #tpu.pipeline_mode<synchronous>, transform_indices = @transform_1, window_bounds = array<i64: 256, 128>}, {pipeline_mode = #tpu.pipeline_mode<synchronous>, transform_indices = @transform_2, window_bounds = array<i64: 1, 128>}, {pipeline_mode = #tpu.pipeline_mode<synchronous>, transform_indices = @transform_3, window_bounds = array<i64: 128, 128>}, {pipeline_mode = #tpu.pipeline_mode<synchronous>, transform_indices = @transform_4, window_bounds = array<i64: 1, 128>}, {pipeline_mode = #tpu.pipeline_mode<synchronous>, transform_indices = @transform_5, window_bounds = array<i64: 128, 128>}, {pipeline_mode = #tpu.pipeline_mode<synchronous>, transform_indices = @transform_6, window_bounds = array<i64: 1, 128>}, {pipeline_mode = #tpu.pipeline_mode<synchronous>, transform_indices = @transform_7, window_bounds = array<i64: 128, 128>}, {pipeline_mode = #tpu.pipeline_mode<synchronous>, transform_indices = @transform_8, window_bounds = array<i64: 1, 128>}, {transform_indices = @transform_9, window_bounds = array<i64: 128, 128>}]} {
    %c0 = arith.constant 0 : index
    %c0_0 = arith.constant 0 : index
    %0 = vector.load %arg1[%c0, %c0_0] : memref<128x256xbf16, #tpu.memory_space<vmem>>, vector<128x256xbf16>
    %c0_1 = arith.constant 0 : index
    %c0_2 = arith.constant 0 : index
    %1 = vector.load %arg2[%c0_1, %c0_2] : memref<256x128xbf16, #tpu.memory_space<vmem>>, vector<256x128xbf16>
    %cst = arith.constant dense<0.000000e+00> : vector<128x128xf32>
    %2 = tpu.matmul %0, %1, %cst {dimension_numbers = #tpu.dot_dimension_numbers<[1], [0], [0], [1], [0, 0, 1, 1], [], []>} : vector<128x256xbf16>, vector<256x128xbf16>, vector<128x128xf32> -> vector<128x128xf32>
    %c0_3 = arith.constant 0 : index
    %c0_4 = arith.constant 0 : index
    %3 = vector.load %arg3[%c0_3, %c0_4] : memref<1x128xf32, #tpu.memory_space<vmem>>, vector<1x128xf32>
    %4 = vector.broadcast %3 : vector<1x128xf32> to vector<128x128xf32>
    %5 = arith.addf %2, %4 : vector<128x128xf32>
    %cst_5 = arith.constant 0.000000e+00 : f32
    %6 = vector.broadcast %cst_5 : f32 to vector<128x128xf32>
    %7 = arith.maximumf %5, %6 : vector<128x128xf32>
    %8 = arith.truncf %7 : vector<128x128xf32> to vector<128x128xbf16>
    %c0_6 = arith.constant 0 : index
    %c0_7 = arith.constant 0 : index
    %9 = vector.load %arg4[%c0_6, %c0_7] : memref<128x128xbf16, #tpu.memory_space<vmem>>, vector<128x128xbf16>
    %cst_8 = arith.constant dense<0.000000e+00> : vector<128x128xf32>
    %10 = tpu.matmul %8, %9, %cst_8 {dimension_numbers = #tpu.dot_dimension_numbers<[1], [0], [0], [1], [0, 0, 1, 1], [], []>} : vector<128x128xbf16>, vector<128x128xbf16>, vector<128x128xf32> -> vector<128x128xf32>
    %c0_9 = arith.constant 0 : index
    %c0_10 = arith.constant 0 : index
    %11 = vector.load %arg5[%c0_9, %c0_10] : memref<1x128xf32, #tpu.memory_space<vmem>>, vector<1x128xf32>
    %12 = vector.broadcast %11 : vector<1x128xf32> to vector<128x128xf32>
    %13 = arith.addf %10, %12 : vector<128x128xf32>
    %cst_11 = arith.constant 0.000000e+00 : f32
    %14 = vector.broadcast %cst_11 : f32 to vector<128x128xf32>
    %15 = arith.maximumf %13, %14 : vector<128x128xf32>
    %16 = arith.truncf %15 : vector<128x128xf32> to vector<128x128xbf16>
    %c0_12 = arith.constant 0 : index
    %c0_13 = arith.constant 0 : index
    %17 = vector.load %arg6[%c0_12, %c0_13] : memref<128x128xbf16, #tpu.memory_space<vmem>>, vector<128x128xbf16>
    %cst_14 = arith.constant dense<0.000000e+00> : vector<128x128xf32>
    %18 = tpu.matmul %16, %17, %cst_14 {dimension_numbers = #tpu.dot_dimension_numbers<[1], [0], [0], [1], [0, 0, 1, 1], [], []>} : vector<128x128xbf16>, vector<128x128xbf16>, vector<128x128xf32> -> vector<128x128xf32>
    %c0_15 = arith.constant 0 : index
    %c0_16 = arith.constant 0 : index
    %19 = vector.load %arg7[%c0_15, %c0_16] : memref<1x128xf32, #tpu.memory_space<vmem>>, vector<1x128xf32>
    %20 = vector.broadcast %19 : vector<1x128xf32> to vector<128x128xf32>
    %21 = arith.addf %18, %20 : vector<128x128xf32>
    %cst_17 = arith.constant 0.000000e+00 : f32
    %22 = vector.broadcast %cst_17 : f32 to vector<128x128xf32>
    %23 = arith.maximumf %21, %22 : vector<128x128xf32>
    %24 = arith.truncf %23 : vector<128x128xf32> to vector<128x128xbf16>
    %c0_18 = arith.constant 0 : index
    %c0_19 = arith.constant 0 : index
    %25 = vector.load %arg8[%c0_18, %c0_19] : memref<128x128xbf16, #tpu.memory_space<vmem>>, vector<128x128xbf16>
    %cst_20 = arith.constant dense<0.000000e+00> : vector<128x128xf32>
    %26 = tpu.matmul %24, %25, %cst_20 {dimension_numbers = #tpu.dot_dimension_numbers<[1], [0], [0], [1], [0, 0, 1, 1], [], []>} : vector<128x128xbf16>, vector<128x128xbf16>, vector<128x128xf32> -> vector<128x128xf32>
    %c0_21 = arith.constant 0 : index
    %c0_22 = arith.constant 0 : index
    %27 = vector.load %arg9[%c0_21, %c0_22] : memref<1x128xf32, #tpu.memory_space<vmem>>, vector<1x128xf32>
    %28 = vector.broadcast %27 : vector<1x128xf32> to vector<128x128xf32>
    %29 = arith.addf %26, %28 : vector<128x128xf32>
    %c0_23 = arith.constant 0 : index
    %c0_24 = arith.constant 0 : index
    %30 = vector.load %arg10[%c0_23, %c0_24] : memref<128x128xf32, #tpu.memory_space<vmem>>, vector<128x128xf32>
    tpu.vector_store %arg10[%c0_23, %c0_24], %29 {strides = array<i32>} : memref<128x128xf32, #tpu.memory_space<vmem>>, vector<128x128xf32>,
    return
  }
  func.func @transform_0(%arg0: i32) -> (i32, i32) {
    %c0_i32 = arith.constant 0 : i32
    %c0_i32_0 = arith.constant 0 : i32
    return %arg0, %c0_i32 : i32, i32
  }
  func.func @transform_1(%arg0: i32) -> (i32, i32) {
    %c0_i32 = arith.constant 0 : i32
    %c0_i32_0 = arith.constant 0 : i32
    %c0_i32_1 = arith.constant 0 : i32
    return %c0_i32, %c0_i32_0 : i32, i32
  }
  func.func @transform_2(%arg0: i32) -> (i32, i32) {
    %c0_i32 = arith.constant 0 : i32
    %c0_i32_0 = arith.constant 0 : i32
    %c0_i32_1 = arith.constant 0 : i32
    return %c0_i32, %c0_i32_0 : i32, i32
  }
  func.func @transform_3(%arg0: i32) -> (i32, i32) {
    %c0_i32 = arith.constant 0 : i32
    %c0_i32_0 = arith.constant 0 : i32
    %c0_i32_1 = arith.constant 0 : i32
    return %c0_i32, %c0_i32_0 : i32, i32
  }
  func.func @transform_4(%arg0: i32) -> (i32, i32) {
    %c0_i32 = arith.constant 0 : i32
    %c0_i32_0 = arith.constant 0 : i32
    %c0_i32_1 = arith.constant 0 : i32
    return %c0_i32, %c0_i32_0 : i32, i32
  }
  func.func @transform_5(%arg0: i32) -> (i32, i32) {
    %c0_i32 = arith.constant 0 : i32
    %c0_i32_0 = arith.constant 0 : i32
    %c0_i32_1 = arith.constant 0 : i32
    return %c0_i32, %c0_i32_0 : i32, i32
  }
  func.func @transform_6(%arg0: i32) -> (i32, i32) {
    %c0_i32 = arith.constant 0 : i32
    %c0_i32_0 = arith.constant 0 : i32
    %c0_i32_1 = arith.constant 0 : i32
    return %c0_i32, %c0_i32_0 : i32, i32
  }
  func.func @transform_7(%arg0: i32) -> (i32, i32) {
    %c0_i32 = arith.constant 0 : i32
    %c0_i32_0 = arith.constant 0 : i32
    %c0_i32_1 = arith.constant 0 : i32
    return %c0_i32, %c0_i32_0 : i32, i32
  }
  func.func @transform_8(%arg0: i32) -> (i32, i32) {
    %c0_i32 = arith.constant 0 : i32
    %c0_i32_0 = arith.constant 0 : i32
    %c0_i32_1 = arith.constant 0 : i32
    return %c0_i32, %c0_i32_0 : i32, i32
  }
  func.func @transform_9(%arg0: i32) -> (i32, i32) {
    %c0_i32 = arith.constant 0 : i32
    %c0_i32_0 = arith.constant 0 : i32
    return %arg0, %c0_i32 : i32, i32
  }
}

</mosaic_0001>

<llo_original>
// kernel: tpu_custom_call.1
$region0: #{tpu_custom_call.1}
  #allocation0 [shape = 'u32[]', space=smem, size = 0x4, offset = 0x4, fixed_abs, tag = 'smem constant byte address 0x4 - core index']
  #allocation1 [shape = 'u32[72,128]{1,0:T(1,128)}', space=vmem, size = 0x9000, scoped, tag = 'internal scratch']
  %s0 = inlined_call_operand.hbm [shape: bf16[128,256], index: 0, kind: input, shape index: {}]
  %s1 = inlined_call_operand.hbm [shape: bf16[256,128], index: 1, kind: input, shape index: {}]
  %s2 = inlined_call_operand.vmem [shape: f32[1,128], index: 2, kind: input, shape index: {}]
  %s3 = inlined_call_operand.hbm [shape: bf16[128,128], index: 3, kind: input, shape index: {}]
  %s4 = inlined_call_operand.vmem [shape: f32[1,128], index: 4, kind: input, shape index: {}]
  %s5 = inlined_call_operand.hbm [shape: bf16[128,128], index: 5, kind: input, shape index: {}]
  %s6 = inlined_call_operand.vmem [shape: f32[1,128], index: 6, kind: input, shape index: {}]
  %s7 = inlined_call_operand.hbm [shape: bf16[128,128], index: 7, kind: input, shape index: {}]
  %s8 = inlined_call_operand.vmem [shape: f32[1,128], index: 8, kind: input, shape index: {}]
  %s9 = inlined_call_operand.hbm [shape: f32[128,128], index: 9, kind: output, shape index: {}]
  %s10 = sld [smem:[#allocation0]]
  $region66: #{tpu_custom_call.1} parent=0
    _
  %s12 = ssub.s32 1, %s10
  %s13 = scalar_select 0, %s12, %s10
  $region1: #{tpu_custom_call.1} parent=0
    #allocation2 [shape = 'u8[65536]{0}', space=vmem, size = 0x10000, scoped, tag = 'input window, operand 0, single buffered']
    #allocation3 [shape = 's32[1]{0}', space=sflag, size = 0x4, scoped, tag = 'scoped memory for tpu_custom_call.1']
    #allocation4 [shape = 's32[1]{0}', space=sflag, size = 0x4, scoped, tag = 'scoped memory for tpu_custom_call.1']
    #allocation5 [shape = 'u8[65536]{0}', space=vmem, size = 0x10000, scoped, tag = 'input window, operand 1, single buffered']
    #allocation6 [shape = 's32[1]{0}', space=sflag, size = 0x4, scoped, tag = 'scoped memory for tpu_custom_call.1']
    #allocation7 [shape = 'u8[32768]{0}', space=vmem, size = 0x8000, scoped, tag = 'input window, operand 3, single buffered']
    #allocation8 [shape = 'u8[32768]{0}', space=vmem, size = 0x8000, scoped, tag = 'input window, operand 5, single buffered']
    #allocation9 [shape = 's32[1]{0}', space=sflag, size = 0x4, scoped, tag = 'scoped memory for tpu_custom_call.1']
    #allocation10 [shape = 'u8[32768]{0}', space=vmem, size = 0x8000, scoped, tag = 'input window, operand 7, single buffered']
    #allocation11 [shape = 'u8[65536]{0}', space=vmem, size = 0x10000, scoped, tag = 'output window, operand 0, single buffered']
    %14 = vsyncpa [#allocation3], 0
    %15 = vsyncpa [#allocation6], 0
    %16 = vsyncpa [#allocation9], 0
    %17 = vsyncpa [#allocation4], 0
    // Predicated region
    $region2: #{tpu_custom_call.1} parent=1 // pred_check
      _
    $region3: #{tpu_custom_call.1} parent=1 // pred_check_branch
      %19 = sbr.rel (0) target = $region5
    $region4: #{tpu_custom_call.1} parent=1 // pred_region
      %21 = vsyncadd [#allocation3], 0
      %s22 = sshll.u32 %s0, 4
      %s23 = int_to_ptr.hbm [resolvable:$true] %s22
      %s24 = sshll.u32 [#allocation2], 4
      %s25 = int_to_ptr.vmem [resolvable:$true] %s24
      %30 = dma.hbm_to_vmem [thread:$0]  %s23, 2048, %s25, [#allocation3], 128, 128, 8
    $region5: #{tpu_custom_call.1} parent=1 // pred_fallthru
      _
    // Predicated region
    $region6: #{tpu_custom_call.1} parent=1 // pred_check
      _
    $region7: #{tpu_custom_call.1} parent=1 // pred_check_branch
      %32 = sbr.rel (0) target = $region9
    $region8: #{tpu_custom_call.1} parent=1 // pred_region
      %34 = vsyncadd [#allocation6], 0
      %s35 = sshll.u32 %s1, 4
      %s36 = int_to_ptr.hbm [resolvable:$true] %s35
      %s37 = sshll.u32 [#allocation5], 4
      %s38 = int_to_ptr.vmem [resolvable:$true] %s37
      %43 = dma.hbm_to_vmem [thread:$0]  %s36, 2048, %s38, [#allocation6], 64, 64, 4
    $region9: #{tpu_custom_call.1} parent=1 // pred_fallthru
      _
    // Predicated region
    $region10: #{tpu_custom_call.1} parent=1 // pred_check
      _
    $region11: #{tpu_custom_call.1} parent=1 // pred_check_branch
      %45 = sbr.rel (0) target = $region13
    $region12: #{tpu_custom_call.1} parent=1 // pred_region
      _
    $region13: #{tpu_custom_call.1} parent=1 // pred_fallthru
      _
    // Predicated region
    $region14: #{tpu_custom_call.1} parent=1 // pred_check
      _
    $region15: #{tpu_custom_call.1} parent=1 // pred_check_branch
      %47 = sbr.rel (0) target = $region17
    $region16: #{tpu_custom_call.1} parent=1 // pred_region
      %49 = vsyncadd [#allocation6], 0
      %s50 = sshll.u32 %s3, 4
      %s51 = int_to_ptr.hbm [resolvable:$true] %s50
      %s52 = sshll.u32 [#allocation7], 4
      %s53 = int_to_ptr.vmem [resolvable:$true] %s52
      %58 = dma.hbm_to_vmem [thread:$0]  %s51, 1024, %s53, [#allocation6], 64, 64, 4
    $region17: #{tpu_custom_call.1} parent=1 // pred_fallthru
      _
    // Predicated region
    $region18: #{tpu_custom_call.1} parent=1 // pred_check
      _
    $region19: #{tpu_custom_call.1} parent=1 // pred_check_branch
      %60 = sbr.rel (0) target = $region21
    $region20: #{tpu_custom_call.1} parent=1 // pred_region
      _
    $region21: #{tpu_custom_call.1} parent=1 // pred_fallthru
      _
    // Predicated region
    $region22: #{tpu_custom_call.1} parent=1 // pred_check
      _
    $region23: #{tpu_custom_call.1} parent=1 // pred_check_branch
      %62 = sbr.rel (0) target = $region25
    $region24: #{tpu_custom_call.1} parent=1 // pred_region
      %64 = vsyncadd [#allocation9], 0
      %s65 = sshll.u32 %s5, 4
      %s66 = int_to_ptr.hbm [resolvable:$true] %s65
      %s67 = sshll.u32 [#allocation8], 4
      %s68 = int_to_ptr.vmem [resolvable:$true] %s67
      %73 = dma.hbm_to_vmem [thread:$0]  %s66, 1024, %s68, [#allocation9], 64, 64, 4
    $region25: #{tpu_custom_call.1} parent=1 // pred_fallthru
      _
    // Predicated region
    $region26: #{tpu_custom_call.1} parent=1 // pred_check
      _
    $region27: #{tpu_custom_call.1} parent=1 // pred_check_branch
      %75 = sbr.rel (0) target = $region29
    $region28: #{tpu_custom_call.1} parent=1 // pred_region
      _
    $region29: #{tpu_custom_call.1} parent=1 // pred_fallthru
      _
    // Predicated region
    $region30: #{tpu_custom_call.1} parent=1 // pred_check
      _
    $region31: #{tpu_custom_call.1} parent=1 // pred_check_branch
      %77 = sbr.rel (0) target = $region33
    $region32: #{tpu_custom_call.1} parent=1 // pred_region
      %79 = vsyncadd [#allocation9], 0
      %s80 = sshll.u32 %s7, 4
      %s81 = int_to_ptr.hbm [resolvable:$true] %s80
      %s82 = sshll.u32 [#allocation10], 4
      %s83 = int_to_ptr.vmem [resolvable:$true] %s82
      %88 = dma.hbm_to_vmem [thread:$0]  %s81, 1024, %s83, [#allocation9], 64, 64, 4
    $region33: #{tpu_custom_call.1} parent=1 // pred_fallthru
      _
    // Predicated region
    $region34: #{tpu_custom_call.1} parent=1 // pred_check
      _
    $region35: #{tpu_custom_call.1} parent=1 // pred_check_branch
      %90 = sbr.rel (0) target = $region37
    $region36: #{tpu_custom_call.1} parent=1 // pred_region
      _
    $region37: #{tpu_custom_call.1} parent=1 // pred_fallthru
      _
    // Predicated region
    $region38: #{tpu_custom_call.1} parent=1 // pred_check
      _
    $region39: #{tpu_custom_call.1} parent=1 // pred_check_branch
      %92 = sbr.rel (0) target = $region41
    $region40: #{tpu_custom_call.1} parent=1 // pred_region
      %94 = dma.done [#allocation3], 2048
    $region41: #{tpu_custom_call.1} parent=1 // pred_fallthru
      _
    // Predicated region
    $region42: #{tpu_custom_call.1} parent=1 // pred_check
      _
    $region43: #{tpu_custom_call.1} parent=1 // pred_check_branch
      %96 = sbr.rel (0) target = $region45
    $region44: #{tpu_custom_call.1} parent=1 // pred_region
      %98 = dma.done [#allocation6], 2048
    $region45: #{tpu_custom_call.1} parent=1 // pred_fallthru
      _
    // Predicated region
    $region46: #{tpu_custom_call.1} parent=1 // pred_check
      _
    $region47: #{tpu_custom_call.1} parent=1 // pred_check_branch
      %100 = sbr.rel (0) target = $region49
    $region48: #{tpu_custom_call.1} parent=1 // pred_region
      %102 = dma.done [#allocation6], 1024
    $region49: #{tpu_custom_call.1} parent=1 // pred_fallthru
      _
    // Predicated region
    $region50: #{tpu_custom_call.1} parent=1 // pred_check
      _
    $region51: #{tpu_custom_call.1} parent=1 // pred_check_branch
      %104 = sbr.rel (0) target = $region53
    $region52: #{tpu_custom_call.1} parent=1 // pred_region
      %106 = dma.done [#allocation9], 1024
    $region53: #{tpu_custom_call.1} parent=1 // pred_fallthru
      _
    // Predicated region
    $region54: #{tpu_custom_call.1} parent=1 // pred_check
      _
    $region55: #{tpu_custom_call.1} parent=1 // pred_check_branch
      %108 = sbr.rel (0) target = $region57
    $region56: #{tpu_custom_call.1} parent=1 // pred_region
      %110 = dma.done [#allocation9], 1024
    $region57: #{tpu_custom_call.1} parent=1 // pred_fallthru
      _
    %v111 = vld [vmem:[#allocation2] sm:$0xff]
    %v112 = vld [vmem:[#allocation2 + $0x8] sm:$0xff]
    %v113 = vld [vmem:[#allocation2 + $0x10] sm:$0xff]
    %v114 = vld [vmem:[#allocation2 + $0x18] sm:$0xff]
    %v115 = vld [vmem:[#allocation2 + $0x20] sm:$0xff]
    %v116 = vld [vmem:[#allocation2 + $0x28] sm:$0xff]
    %v117 = vld [vmem:[#allocation2 + $0x30] sm:$0xff]
    %v118 = vld [vmem:[#allocation2 + $0x38] sm:$0xff]
    %v119 = vld [vmem:[#allocation2 + $0x40] sm:$0xff]
    %v120 = vld [vmem:[#allocation2 + $0x48] sm:$0xff]
    %v121 = vld [vmem:[#allocation2 + $0x50] sm:$0xff]
    %v122 = vld [vmem:[#allocation2 + $0x58] sm:$0xff]
    %v123 = vld [vmem:[#allocation2 + $0x60] sm:$0xff]
    %v124 = vld [vmem:[#allocation2 + $0x68] sm:$0xff]
    %v125 = vld [vmem:[#allocation2 + $0x70] sm:$0xff]
    %v126 = vld [vmem:[#allocation2 + $0x78] sm:$0xff]
    %v127 = vld [vmem:[#allocation5] sm:$0xf]
    %v128 = vld [vmem:[#allocation5 + $0x4] sm:$0xf]
    %v129 = vld [vmem:[#allocation5 + $0x8] sm:$0xf]
    %v130 = vld [vmem:[#allocation5 + $0xc] sm:$0xf]
    %v131 = vld [vmem:[#allocation5 + $0x10] sm:$0xf]
    %v132 = vld [vmem:[#allocation5 + $0x14] sm:$0xf]
    %v133 = vld [vmem:[#allocation5 + $0x18] sm:$0xf]
    %v134 = vld [vmem:[#allocation5 + $0x1c] sm:$0xf]
    %v135 = vld [vmem:[#allocation5 + $0x20] sm:$0xf]
    %v136 = vld [vmem:[#allocation5 + $0x24] sm:$0xf]
    %v137 = vld [vmem:[#allocation5 + $0x28] sm:$0xf]
    %v138 = vld [vmem:[#allocation5 + $0x2c] sm:$0xf]
    %v139 = vld [vmem:[#allocation5 + $0x30] sm:$0xf]
    %v140 = vld [vmem:[#allocation5 + $0x34] sm:$0xf]
    %v141 = vld [vmem:[#allocation5 + $0x38] sm:$0xf]
    %v142 = vld [vmem:[#allocation5 + $0x3c] sm:$0xf]
    %v143 = vld [vmem:[#allocation5 + $0x40] sm:$0xf]
    %v144 = vld [vmem:[#allocation5 + $0x44] sm:$0xf]
    %v145 = vld [vmem:[#allocation5 + $0x48] sm:$0xf]
    %v146 = vld [vmem:[#allocation5 + $0x4c] sm:$0xf]
    %v147 = vld [vmem:[#allocation5 + $0x50] sm:$0xf]
    %v148 = vld [vmem:[#allocation5 + $0x54] sm:$0xf]
    %v149 = vld [vmem:[#allocation5 + $0x58] sm:$0xf]
    %v150 = vld [vmem:[#allocation5 + $0x5c] sm:$0xf]
    %v151 = vld [vmem:[#allocation5 + $0x60] sm:$0xf]
    %v152 = vld [vmem:[#allocation5 + $0x64] sm:$0xf]
    %v153 = vld [vmem:[#allocation5 + $0x68] sm:$0xf]
    %v154 = vld [vmem:[#allocation5 + $0x6c] sm:$0xf]
    %v155 = vld [vmem:[#allocation5 + $0x70] sm:$0xf]
    %v156 = vld [vmem:[#allocation5 + $0x74] sm:$0xf]
    %v157 = vld [vmem:[#allocation5 + $0x78] sm:$0xf]
    %v158 = vld [vmem:[#allocation5 + $0x7c] sm:$0xf]
    %v159 = vld [vmem:[%s2] sm:$0x1]
    %v161 = vperm.slane %v159, 0
    %v179 = vunpack.c.l.b16 %v111
    %v180 = vunpack.c.h.b16 %v111
    %v181 = vunpack.c.l.b16 %v112
    %v182 = vunpack.c.h.b16 %v112
    %v183 = vunpack.c.l.b16 %v113
    %v184 = vunpack.c.h.b16 %v113
    %v185 = vunpack.c.l.b16 %v114
    %v186 = vunpack.c.h.b16 %v114
    %v187 = vunpack.c.l.b16 %v115
    %v188 = vunpack.c.h.b16 %v115
    %v189 = vunpack.c.l.b16 %v116
    %v190 = vunpack.c.h.b16 %v116
    %v191 = vunpack.c.l.b16 %v117
    %v192 = vunpack.c.h.b16 %v117
    %v193 = vunpack.c.l.b16 %v118
    %v194 = vunpack.c.h.b16 %v118
    %v195 = vunpack.c.l.b16 %v119
    %v196 = vunpack.c.h.b16 %v119
    %v197 = vunpack.c.l.b16 %v120
    %v198 = vunpack.c.h.b16 %v120
    %v199 = vunpack.c.l.b16 %v121
    %v200 = vunpack.c.h.b16 %v121
    %v201 = vunpack.c.l.b16 %v122
    %v202 = vunpack.c.h.b16 %v122
    %v203 = vunpack.c.l.b16 %v123
    %v204 = vunpack.c.h.b16 %v123
    %v205 = vunpack.c.l.b16 %v124
    %v206 = vunpack.c.h.b16 %v124
    %v207 = vunpack.c.l.b16 %v125
    %v208 = vunpack.c.h.b16 %v125
    %v209 = vunpack.c.l.b16 %v126
    %v210 = vunpack.c.h.b16 %v126
    %v211 = vpack.c.b16 %v181, %v179
    %v212 = vpack.c.b16 %v182, %v180
    %v213 = vpack.c.b16 %v185, %v183
    %v214 = vpack.c.b16 %v186, %v184
    %v215 = vpack.c.b16 %v189, %v187
    %v216 = vpack.c.b16 %v190, %v188
    %v217 = vpack.c.b16 %v193, %v191
    %v218 = vpack.c.b16 %v194, %v192
    %v219 = vpack.c.b16 %v197, %v195
    %v220 = vpack.c.b16 %v198, %v196
    %v221 = vpack.c.b16 %v201, %v199
    %v222 = vpack.c.b16 %v202, %v200
    %v223 = vpack.c.b16 %v205, %v203
    %v224 = vpack.c.b16 %v206, %v204
    %v225 = vpack.c.b16 %v209, %v207
    %v226 = vpack.c.b16 %v210, %v208
    %v275 = vunpack.c.l.b16 %v127
    %v276 = vunpack.c.l.b16 %v128
    %v277 = vunpack.c.l.b16 %v129
    %v278 = vunpack.c.l.b16 %v130
    %v279 = vunpack.c.l.b16 %v131
    %v280 = vunpack.c.l.b16 %v132
    %v281 = vunpack.c.l.b16 %v133
    %v282 = vunpack.c.l.b16 %v134
    %v283 = vunpack.c.l.b16 %v135
    %v284 = vunpack.c.l.b16 %v136
    %v285 = vunpack.c.l.b16 %v137
    %v286 = vunpack.c.l.b16 %v138
    %v287 = vunpack.c.l.b16 %v139
    %v288 = vunpack.c.l.b16 %v140
    %v289 = vunpack.c.l.b16 %v141
    %v290 = vunpack.c.l.b16 %v142
    %v291 = vunpack.c.l.b16 %v143
    %v292 = vunpack.c.l.b16 %v144
    %v293 = vunpack.c.l.b16 %v145
    %v294 = vunpack.c.l.b16 %v146
    %v295 = vunpack.c.l.b16 %v147
    %v296 = vunpack.c.l.b16 %v148
    %v297 = vunpack.c.l.b16 %v149
    %v298 = vunpack.c.l.b16 %v150
    %v299 = vunpack.c.l.b16 %v151
    %v300 = vunpack.c.l.b16 %v152
    %v301 = vunpack.c.l.b16 %v153
    %v302 = vunpack.c.l.b16 %v154
    %v303 = vunpack.c.l.b16 %v155
    %v304 = vunpack.c.l.b16 %v156
    %v305 = vunpack.c.l.b16 %v157
    %v306 = vunpack.c.l.b16 %v158
    %v307 = vpack.c.b16 %v276, %v275
    %v308 = vpack.c.b16 %v278, %v277
    %v309 = vpack.c.b16 %v280, %v279
    %v310 = vpack.c.b16 %v282, %v281
    %v311 = vpack.c.b16 %v284, %v283
    %v312 = vpack.c.b16 %v286, %v285
    %v313 = vpack.c.b16 %v288, %v287
    %v314 = vpack.c.b16 %v290, %v289
    %v315 = vpack.c.b16 %v292, %v291
    %v316 = vpack.c.b16 %v294, %v293
    %v317 = vpack.c.b16 %v296, %v295
    %v318 = vpack.c.b16 %v298, %v297
    %v319 = vpack.c.b16 %v300, %v299
    %v320 = vpack.c.b16 %v302, %v301
    %v321 = vpack.c.b16 %v304, %v303
    %v322 = vpack.c.b16 %v306, %v305
    %339 = vmatpush.bf16.msra.mxu0 %v314
    %340 = vmatpush.bf16.msra.mxu0 %v313
    %341 = vmatpush.bf16.msra.mxu0 %v312
    %342 = vmatpush.bf16.msra.mxu0 %v311
    %343 = vmatpush.bf16.msra.mxu0 %v310
    %344 = vmatpush.bf16.msra.mxu0 %v309
    %345 = vmatpush.bf16.msra.mxu0 %v308
    %346 = vmatpush.bf16.msra.mxu0 %v307
    %347 = vmatmul.bf16.gmra.mxu0 %v211
    %v348 = vpop.f32.mrf.mxu0
    %v349 = vadd.f32 %v161, %v348
    %v350 = vpop.f32.mrf.mxu0
    %v351 = vadd.f32 %v161, %v350
    %352 = vmatmul.bf16.gmra.mxu0 %v213
    %v353 = vpop.f32.mrf.mxu0
    %v354 = vadd.f32 %v161, %v353
    %v355 = vpop.f32.mrf.mxu0
    %v356 = vadd.f32 %v161, %v355
    %357 = vmatmul.bf16.gmra.mxu0 %v215
    %v358 = vpop.f32.mrf.mxu0
    %v359 = vadd.f32 %v161, %v358
    %v360 = vpop.f32.mrf.mxu0
    %v361 = vadd.f32 %v161, %v360
    %362 = vmatmul.bf16.gmra.mxu0 %v217
    %v363 = vpop.f32.mrf.mxu0
    %v364 = vadd.f32 %v161, %v363
    %v365 = vpop.f32.mrf.mxu0
    %v366 = vadd.f32 %v161, %v365
    %367 = vmatmul.bf16.gmra.mxu0 %v219
    %v368 = vpop.f32.mrf.mxu0
    %v369 = vadd.f32 %v161, %v368
    %v370 = vpop.f32.mrf.mxu0
    %v371 = vadd.f32 %v161, %v370
    %372 = vmatmul.bf16.gmra.mxu0 %v221
    %v373 = vpop.f32.mrf.mxu0
    %v374 = vadd.f32 %v161, %v373
    %v375 = vpop.f32.mrf.mxu0
    %v376 = vadd.f32 %v161, %v375
    %377 = vmatmul.bf16.gmra.mxu0 %v223
    %v378 = vpop.f32.mrf.mxu0
    %v379 = vadd.f32 %v161, %v378
    %v380 = vpop.f32.mrf.mxu0
    %v381 = vadd.f32 %v161, %v380
    %382 = vmatmul.bf16.gmra.mxu0 %v225
    %v383 = vpop.f32.mrf.mxu0
    %v384 = vadd.f32 %v161, %v383
    %v385 = vpop.f32.mrf.mxu0
    %v386 = vadd.f32 %v161, %v385
    %387 = vdwg.mxu0
    %388 = vmatpush.bf16.msra.mxu0 %v322
    %389 = vmatpush.bf16.msra.mxu0 %v321
    %390 = vmatpush.bf16.msra.mxu0 %v320
    %391 = vmatpush.bf16.msra.mxu0 %v319
    %392 = vmatpush.bf16.msra.mxu0 %v318
    %393 = vmatpush.bf16.msra.mxu0 %v317
    %394 = vmatpush.bf16.msra.mxu0 %v316
    %395 = vmatpush.bf16.msra.mxu0 %v315
    %396 = vmatmul.bf16.gmra.mxu0 %v212
    %v397 = vpop.f32.mrf.mxu0
    %v398 = vadd.f32 %v349, %v397
    %v399 = vpop.f32.mrf.mxu0
    %v400 = vadd.f32 %v351, %v399
    %401 = vmatmul.bf16.gmra.mxu0 %v214
    %v402 = vpop.f32.mrf.mxu0
    %v403 = vadd.f32 %v354, %v402
    %v404 = vpop.f32.mrf.mxu0
    %v405 = vadd.f32 %v356, %v404
    %406 = vmatmul.bf16.gmra.mxu0 %v216
    %v407 = vpop.f32.mrf.mxu0
    %v408 = vadd.f32 %v359, %v407
    %v409 = vpop.f32.mrf.mxu0
    %v410 = vadd.f32 %v361, %v409
    %411 = vmatmul.bf16.gmra.mxu0 %v218
    %v412 = vpop.f32.mrf.mxu0
    %v413 = vadd.f32 %v364, %v412
    %v414 = vpop.f32.mrf.mxu0
    %v415 = vadd.f32 %v366, %v414
    %416 = vmatmul.bf16.gmra.mxu0 %v220
    %v417 = vpop.f32.mrf.mxu0
    %v418 = vadd.f32 %v369, %v417
    %v419 = vpop.f32.mrf.mxu0
    %v420 = vadd.f32 %v371, %v419
    %421 = vmatmul.bf16.gmra.mxu0 %v222
    %v422 = vpop.f32.mrf.mxu0
    %v423 = vadd.f32 %v374, %v422
    %v424 = vpop.f32.mrf.mxu0
    %v425 = vadd.f32 %v376, %v424
    %426 = vmatmul.bf16.gmra.mxu0 %v224
    %v427 = vpop.f32.mrf.mxu0
    %v428 = vadd.f32 %v379, %v427
    %v429 = vpop.f32.mrf.mxu0
    %v430 = vadd.f32 %v381, %v429
    %431 = vmatmul.bf16.gmra.mxu0 %v226
    %v432 = vpop.f32.mrf.mxu0
    %v433 = vadd.f32 %v384, %v432
    %v434 = vpop.f32.mrf.mxu0
    %v435 = vadd.f32 %v386, %v434
    %436 = vdwg.mxu0
    %v437 = vmax.f32 %v398, 0.0
    %v438 = vmax.f32 %v400, 0.0
    %v439 = vmax.f32 %v403, 0.0
    %v440 = vmax.f32 %v405, 0.0
    %v441 = vmax.f32 %v408, 0.0
    %v442 = vmax.f32 %v410, 0.0
    %v443 = vmax.f32 %v413, 0.0
    %v444 = vmax.f32 %v415, 0.0
    %v445 = vmax.f32 %v418, 0.0
    %v446 = vmax.f32 %v420, 0.0
    %v447 = vmax.f32 %v423, 0.0
    %v448 = vmax.f32 %v425, 0.0
    %v449 = vmax.f32 %v428, 0.0
    %v450 = vmax.f32 %v430, 0.0
    %v451 = vmax.f32 %v433, 0.0
    %v452 = vmax.f32 %v435, 0.0
    %v453 = vpack.c.bf16 %v438, %v437
    %v454 = vpack.c.bf16 %v440, %v439
    %v455 = vpack.c.bf16 %v442, %v441
    %v456 = vpack.c.bf16 %v444, %v443
    %v457 = vpack.c.bf16 %v446, %v445
    %v458 = vpack.c.bf16 %v448, %v447
    %v459 = vpack.c.bf16 %v450, %v449
    %v460 = vpack.c.bf16 %v452, %v451
    %v461 = vld [vmem:[#allocation7] sm:$0xf]
    %v462 = vld [vmem:[#allocation7 + $0x4] sm:$0xf]
    %v463 = vld [vmem:[#allocation7 + $0x8] sm:$0xf]
    %v464 = vld [vmem:[#allocation7 + $0xc] sm:$0xf]
    %v465 = vld [vmem:[#allocation7 + $0x10] sm:$0xf]
    %v466 = vld [vmem:[#allocation7 + $0x14] sm:$0xf]
    %v467 = vld [vmem:[#allocation7 + $0x18] sm:$0xf]
    %v468 = vld [vmem:[#allocation7 + $0x1c] sm:$0xf]
    %v469 = vld [vmem:[#allocation7 + $0x20] sm:$0xf]
    %v470 = vld [vmem:[#allocation7 + $0x24] sm:$0xf]
    %v471 = vld [vmem:[#allocation7 + $0x28] sm:$0xf]
    %v472 = vld [vmem:[#allocation7 + $0x2c] sm:$0xf]
    %v473 = vld [vmem:[#allocation7 + $0x30] sm:$0xf]
    %v474 = vld [vmem:[#allocation7 + $0x34] sm:$0xf]
    %v475 = vld [vmem:[#allocation7 + $0x38] sm:$0xf]
    %v476 = vld [vmem:[#allocation7 + $0x3c] sm:$0xf]
    %v477 = vld [vmem:[%s4] sm:$0x1]
    %v479 = vperm.slane %v477, 0
    %v497 = vunpack.c.l.b16 %v461
    %v498 = vunpack.c.l.b16 %v462
    %v499 = vunpack.c.l.b16 %v463
    %v500 = vunpack.c.l.b16 %v464
    %v501 = vunpack.c.l.b16 %v465
    %v502 = vunpack.c.l.b16 %v466
    %v503 = vunpack.c.l.b16 %v467
    %v504 = vunpack.c.l.b16 %v468
    %v505 = vunpack.c.l.b16 %v469
    %v506 = vunpack.c.l.b16 %v470
    %v507 = vunpack.c.l.b16 %v471
    %v508 = vunpack.c.l.b16 %v472
    %v509 = vunpack.c.l.b16 %v473
    %v510 = vunpack.c.l.b16 %v474
    %v511 = vunpack.c.l.b16 %v475
    %v512 = vunpack.c.l.b16 %v476
    %v513 = vpack.c.b16 %v498, %v497
    %v514 = vpack.c.b16 %v500, %v499
    %v515 = vpack.c.b16 %v502, %v501
    %v516 = vpack.c.b16 %v504, %v503
    %v517 = vpack.c.b16 %v506, %v505
    %v518 = vpack.c.b16 %v508, %v507
    %v519 = vpack.c.b16 %v510, %v509
    %v520 = vpack.c.b16 %v512, %v511
    %529 = vmatpush.bf16.msra.mxu0 %v520
    %530 = vmatpush.bf16.msra.mxu0 %v519
    %531 = vmatpush.bf16.msra.mxu0 %v518
    %532 = vmatpush.bf16.msra.mxu0 %v517
    %533 = vmatpush.bf16.msra.mxu0 %v516
    %534 = vmatpush.bf16.msra.mxu0 %v515
    %535 = vmatpush.bf16.msra.mxu0 %v514
    %536 = vmatpush.bf16.msra.mxu0 %v513
    %537 = vmatmul.bf16.gmra.mxu0 %v453
    %v538 = vpop.f32.mrf.mxu0
    %v539 = vadd.f32 %v479, %v538
    %v540 = vpop.f32.mrf.mxu0
    %v541 = vadd.f32 %v479, %v540
    %542 = vmatmul.bf16.gmra.mxu0 %v454
    %v543 = vpop.f32.mrf.mxu0
    %v544 = vadd.f32 %v479, %v543
    %v545 = vpop.f32.mrf.mxu0
    %v546 = vadd.f32 %v479, %v545
    %547 = vmatmul.bf16.gmra.mxu0 %v455
    %v548 = vpop.f32.mrf.mxu0
    %v549 = vadd.f32 %v479, %v548
    %v550 = vpop.f32.mrf.mxu0
    %v551 = vadd.f32 %v479, %v550
    %552 = vmatmul.bf16.gmra.mxu0 %v456
    %v553 = vpop.f32.mrf.mxu0
    %v554 = vadd.f32 %v479, %v553
    %v555 = vpop.f32.mrf.mxu0
    %v556 = vadd.f32 %v479, %v555
    %557 = vmatmul.bf16.gmra.mxu0 %v457
    %v558 = vpop.f32.mrf.mxu0
    %v559 = vadd.f32 %v479, %v558
    %v560 = vpop.f32.mrf.mxu0
    %v561 = vadd.f32 %v479, %v560
    %562 = vmatmul.bf16.gmra.mxu0 %v458
    %v563 = vpop.f32.mrf.mxu0
    %v564 = vadd.f32 %v479, %v563
    %v565 = vpop.f32.mrf.mxu0
    %v566 = vadd.f32 %v479, %v565
    %567 = vmatmul.bf16.gmra.mxu0 %v459
    %v568 = vpop.f32.mrf.mxu0
    %v569 = vadd.f32 %v479, %v568
    %v570 = vpop.f32.mrf.mxu0
    %v571 = vadd.f32 %v479, %v570
    %572 = vmatmul.bf16.gmra.mxu0 %v460
    %v573 = vpop.f32.mrf.mxu0
    %v574 = vadd.f32 %v479, %v573
    %v575 = vpop.f32.mrf.mxu0
    %v576 = vadd.f32 %v479, %v575
    %577 = vdwg.mxu0
    %v578 = vmax.f32 %v539, 0.0
    %v579 = vmax.f32 %v541, 0.0
    %v580 = vmax.f32 %v544, 0.0
    %v581 = vmax.f32 %v546, 0.0
    %v582 = vmax.f32 %v549, 0.0
    %v583 = vmax.f32 %v551, 0.0
    %v584 = vmax.f32 %v554, 0.0
    %v585 = vmax.f32 %v556, 0.0
    %v586 = vmax.f32 %v559, 0.0
    %v587 = vmax.f32 %v561, 0.0
    %v588 = vmax.f32 %v564, 0.0
    %v589 = vmax.f32 %v566, 0.0
    %v590 = vmax.f32 %v569, 0.0
    %v591 = vmax.f32 %v571, 0.0
    %v592 = vmax.f32 %v574, 0.0
    %v593 = vmax.f32 %v576, 0.0
    %v594 = vpack.c.bf16 %v579, %v578
    %v595 = vpack.c.bf16 %v581, %v580
    %v596 = vpack.c.bf16 %v583, %v582
    %v597 = vpack.c.bf16 %v585, %v584
    %v598 = vpack.c.bf16 %v587, %v586
    %v599 = vpack.c.bf16 %v589, %v588
    %v600 = vpack.c.bf16 %v591, %v590
    %v601 = vpack.c.bf16 %v593, %v592
    %v602 = vld [vmem:[#allocation8] sm:$0xf]
    %v603 = vld [vmem:[#allocation8 + $0x4] sm:$0xf]
    %v604 = vld [vmem:[#allocation8 + $0x8] sm:$0xf]
    %v605 = vld [vmem:[#allocation8 + $0xc] sm:$0xf]
    %v606 = vld [vmem:[#allocation8 + $0x10] sm:$0xf]
    %v607 = vld [vmem:[#allocation8 + $0x14] sm:$0xf]
    %v608 = vld [vmem:[#allocation8 + $0x18] sm:$0xf]
    %v609 = vld [vmem:[#allocation8 + $0x1c] sm:$0xf]
    %v610 = vld [vmem:[#allocation8 + $0x20] sm:$0xf]
    %v611 = vld [vmem:[#allocation8 + $0x24] sm:$0xf]
    %v612 = vld [vmem:[#allocation8 + $0x28] sm:$0xf]
    %v613 = vld [vmem:[#allocation8 + $0x2c] sm:$0xf]
    %v614 = vld [vmem:[#allocation8 + $0x30] sm:$0xf]
    %v615 = vld [vmem:[#allocation8 + $0x34] sm:$0xf]
    %v616 = vld [vmem:[#allocation8 + $0x38] sm:$0xf]
    %v617 = vld [vmem:[#allocation8 + $0x3c] sm:$0xf]
    %v618 = vld [vmem:[%s6] sm:$0x1]
    %v620 = vperm.slane %v618, 0
    %v638 = vunpack.c.l.b16 %v602
    %v639 = vunpack.c.l.b16 %v603
    %v640 = vunpack.c.l.b16 %v604
    %v641 = vunpack.c.l.b16 %v605
    %v642 = vunpack.c.l.b16 %v606
    %v643 = vunpack.c.l.b16 %v607
    %v644 = vunpack.c.l.b16 %v608
    %v645 = vunpack.c.l.b16 %v609
    %v646 = vunpack.c.l.b16 %v610
    %v647 = vunpack.c.l.b16 %v611
    %v648 = vunpack.c.l.b16 %v612
    %v649 = vunpack.c.l.b16 %v613
    %v650 = vunpack.c.l.b16 %v614
    %v651 = vunpack.c.l.b16 %v615
    %v652 = vunpack.c.l.b16 %v616
    %v653 = vunpack.c.l.b16 %v617
    %v654 = vpack.c.b16 %v639, %v638
    %v655 = vpack.c.b16 %v641, %v640
    %v656 = vpack.c.b16 %v643, %v642
    %v657 = vpack.c.b16 %v645, %v644
    %v658 = vpack.c.b16 %v647, %v646
    %v659 = vpack.c.b16 %v649, %v648
    %v660 = vpack.c.b16 %v651, %v650
    %v661 = vpack.c.b16 %v653, %v652
    %670 = vmatpush.bf16.msra.mxu0 %v661
    %671 = vmatpush.bf16.msra.mxu0 %v660
    %672 = vmatpush.bf16.msra.mxu0 %v659
    %673 = vmatpush.bf16.msra.mxu0 %v658
    %674 = vmatpush.bf16.msra.mxu0 %v657
    %675 = vmatpush.bf16.msra.mxu0 %v656
    %676 = vmatpush.bf16.msra.mxu0 %v655
    %677 = vmatpush.bf16.msra.mxu0 %v654
    %678 = vmatmul.bf16.gmra.mxu0 %v594
    %v679 = vpop.f32.mrf.mxu0
    %v680 = vadd.f32 %v620, %v679
    %v681 = vpop.f32.mrf.mxu0
    %v682 = vadd.f32 %v620, %v681
    %683 = vmatmul.bf16.gmra.mxu0 %v595
    %v684 = vpop.f32.mrf.mxu0
    %v685 = vadd.f32 %v620, %v684
    %v686 = vpop.f32.mrf.mxu0
    %v687 = vadd.f32 %v620, %v686
    %688 = vmatmul.bf16.gmra.mxu0 %v596
    %v689 = vpop.f32.mrf.mxu0
    %v690 = vadd.f32 %v620, %v689
    %v691 = vpop.f32.mrf.mxu0
    %v692 = vadd.f32 %v620, %v691
    %693 = vmatmul.bf16.gmra.mxu0 %v597
    %v694 = vpop.f32.mrf.mxu0
    %v695 = vadd.f32 %v620, %v694
    %v696 = vpop.f32.mrf.mxu0
    %v697 = vadd.f32 %v620, %v696
    %698 = vmatmul.bf16.gmra.mxu0 %v598
    %v699 = vpop.f32.mrf.mxu0
    %v700 = vadd.f32 %v620, %v699
    %v701 = vpop.f32.mrf.mxu0
    %v702 = vadd.f32 %v620, %v701
    %703 = vmatmul.bf16.gmra.mxu0 %v599
    %v704 = vpop.f32.mrf.mxu0
    %v705 = vadd.f32 %v620, %v704
    %v706 = vpop.f32.mrf.mxu0
    %v707 = vadd.f32 %v620, %v706
    %708 = vmatmul.bf16.gmra.mxu0 %v600
    %v709 = vpop.f32.mrf.mxu0
    %v710 = vadd.f32 %v620, %v709
    %v711 = vpop.f32.mrf.mxu0
    %v712 = vadd.f32 %v620, %v711
    %713 = vmatmul.bf16.gmra.mxu0 %v601
    %v714 = vpop.f32.mrf.mxu0
    %v715 = vadd.f32 %v620, %v714
    %v716 = vpop.f32.mrf.mxu0
    %v717 = vadd.f32 %v620, %v716
    %718 = vdwg.mxu0
    %v719 = vmax.f32 %v680, 0.0
    %v720 = vmax.f32 %v682, 0.0
    %v721 = vmax.f32 %v685, 0.0
    %v722 = vmax.f32 %v687, 0.0
    %v723 = vmax.f32 %v690, 0.0
    %v724 = vmax.f32 %v692, 0.0
    %v725 = vmax.f32 %v695, 0.0
    %v726 = vmax.f32 %v697, 0.0
    %v727 = vmax.f32 %v700, 0.0
    %v728 = vmax.f32 %v702, 0.0
    %v729 = vmax.f32 %v705, 0.0
    %v730 = vmax.f32 %v707, 0.0
    %v731 = vmax.f32 %v710, 0.0
    %v732 = vmax.f32 %v712, 0.0
    %v733 = vmax.f32 %v715, 0.0
    %v734 = vmax.f32 %v717, 0.0
    %v735 = vpack.c.bf16 %v720, %v719
    %v736 = vpack.c.bf16 %v722, %v721
    %v737 = vpack.c.bf16 %v724, %v723
    %v738 = vpack.c.bf16 %v726, %v725
    %v739 = vpack.c.bf16 %v728, %v727
    %v740 = vpack.c.bf16 %v730, %v729
    %v741 = vpack.c.bf16 %v732, %v731
    %v742 = vpack.c.bf16 %v734, %v733
    %v743 = vld [vmem:[#allocation10] sm:$0xf]
    %v744 = vld [vmem:[#allocation10 + $0x4] sm:$0xf]
    %v745 = vld [vmem:[#allocation10 + $0x8] sm:$0xf]
    %v746 = vld [vmem:[#allocation10 + $0xc] sm:$0xf]
    %v747 = vld [vmem:[#allocation10 + $0x10] sm:$0xf]
    %v748 = vld [vmem:[#allocation10 + $0x14] sm:$0xf]
    %v749 = vld [vmem:[#allocation10 + $0x18] sm:$0xf]
    %v750 = vld [vmem:[#allocation10 + $0x1c] sm:$0xf]
    %v751 = vld [vmem:[#allocation10 + $0x20] sm:$0xf]
    %v752 = vld [vmem:[#allocation10 + $0x24] sm:$0xf]
    %v753 = vld [vmem:[#allocation10 + $0x28] sm:$0xf]
    %v754 = vld [vmem:[#allocation10 + $0x2c] sm:$0xf]
    %v755 = vld [vmem:[#allocation10 + $0x30] sm:$0xf]
    %v756 = vld [vmem:[#allocation10 + $0x34] sm:$0xf]
    %v757 = vld [vmem:[#allocation10 + $0x38] sm:$0xf]
    %v758 = vld [vmem:[#allocation10 + $0x3c] sm:$0xf]
    %v759 = vld [vmem:[%s8] sm:$0x1]
    %v761 = vperm.slane %v759, 0
    %v779 = vunpack.c.l.b16 %v743
    %v780 = vunpack.c.l.b16 %v744
    %v781 = vunpack.c.l.b16 %v745
    %v782 = vunpack.c.l.b16 %v746
    %v783 = vunpack.c.l.b16 %v747
    %v784 = vunpack.c.l.b16 %v748
    %v785 = vunpack.c.l.b16 %v749
    %v786 = vunpack.c.l.b16 %v750
    %v787 = vunpack.c.l.b16 %v751
    %v788 = vunpack.c.l.b16 %v752
    %v789 = vunpack.c.l.b16 %v753
    %v790 = vunpack.c.l.b16 %v754
    %v791 = vunpack.c.l.b16 %v755
    %v792 = vunpack.c.l.b16 %v756
    %v793 = vunpack.c.l.b16 %v757
    %v794 = vunpack.c.l.b16 %v758
    %v795 = vpack.c.b16 %v780, %v779
    %v796 = vpack.c.b16 %v782, %v781
    %v797 = vpack.c.b16 %v784, %v783
    %v798 = vpack.c.b16 %v786, %v785
    %v799 = vpack.c.b16 %v788, %v787
    %v800 = vpack.c.b16 %v790, %v789
    %v801 = vpack.c.b16 %v792, %v791
    %v802 = vpack.c.b16 %v794, %v793
    %811 = vmatpush.bf16.msra.mxu0 %v802
    %812 = vmatpush.bf16.msra.mxu0 %v801
    %813 = vmatpush.bf16.msra.mxu0 %v800
    %814 = vmatpush.bf16.msra.mxu0 %v799
    %815 = vmatpush.bf16.msra.mxu0 %v798
    %816 = vmatpush.bf16.msra.mxu0 %v797
    %817 = vmatpush.bf16.msra.mxu0 %v796
    %818 = vmatpush.bf16.msra.mxu0 %v795
    %819 = vmatmul.bf16.gmra.mxu0 %v735
    %v820 = vpop.f32.mrf.mxu0
    %v821 = vadd.f32 %v761, %v820
    %v822 = vpop.f32.mrf.mxu0
    %v823 = vadd.f32 %v761, %v822
    %824 = vmatmul.bf16.gmra.mxu0 %v736
    %v825 = vpop.f32.mrf.mxu0
    %v826 = vadd.f32 %v761, %v825
    %v827 = vpop.f32.mrf.mxu0
    %v828 = vadd.f32 %v761, %v827
    %829 = vmatmul.bf16.gmra.mxu0 %v737
    %v830 = vpop.f32.mrf.mxu0
    %v831 = vadd.f32 %v761, %v830
    %v832 = vpop.f32.mrf.mxu0
    %v833 = vadd.f32 %v761, %v832
    %834 = vmatmul.bf16.gmra.mxu0 %v738
    %v835 = vpop.f32.mrf.mxu0
    %v836 = vadd.f32 %v761, %v835
    %v837 = vpop.f32.mrf.mxu0
    %v838 = vadd.f32 %v761, %v837
    %839 = vmatmul.bf16.gmra.mxu0 %v739
    %v840 = vpop.f32.mrf.mxu0
    %v841 = vadd.f32 %v761, %v840
    %v842 = vpop.f32.mrf.mxu0
    %v843 = vadd.f32 %v761, %v842
    %844 = vmatmul.bf16.gmra.mxu0 %v740
    %v845 = vpop.f32.mrf.mxu0
    %v846 = vadd.f32 %v761, %v845
    %v847 = vpop.f32.mrf.mxu0
    %v848 = vadd.f32 %v761, %v847
    %849 = vmatmul.bf16.gmra.mxu0 %v741
    %v850 = vpop.f32.mrf.mxu0
    %v851 = vadd.f32 %v761, %v850
    %v852 = vpop.f32.mrf.mxu0
    %v853 = vadd.f32 %v761, %v852
    %854 = vmatmul.bf16.gmra.mxu0 %v742
    %v855 = vpop.f32.mrf.mxu0
    %v856 = vadd.f32 %v761, %v855
    %v857 = vpop.f32.mrf.mxu0
    %v858 = vadd.f32 %v761, %v857
    %859 = vdwg.mxu0
    %860 = vst [vmem:[#allocation11] sm:$0xff] %v821
    %861 = vst [vmem:[#allocation11 + $0x8] sm:$0xff] %v823
    %862 = vst [vmem:[#allocation11 + $0x10] sm:$0xff] %v826
    %863 = vst [vmem:[#allocation11 + $0x18] sm:$0xff] %v828
    %864 = vst [vmem:[#allocation11 + $0x20] sm:$0xff] %v831
    %865 = vst [vmem:[#allocation11 + $0x28] sm:$0xff] %v833
    %866 = vst [vmem:[#allocation11 + $0x30] sm:$0xff] %v836
    %867 = vst [vmem:[#allocation11 + $0x38] sm:$0xff] %v838
    %868 = vst [vmem:[#allocation11 + $0x40] sm:$0xff] %v841
    %869 = vst [vmem:[#allocation11 + $0x48] sm:$0xff] %v843
    %870 = vst [vmem:[#allocation11 + $0x50] sm:$0xff] %v846
    %871 = vst [vmem:[#allocation11 + $0x58] sm:$0xff] %v848
    %872 = vst [vmem:[#allocation11 + $0x60] sm:$0xff] %v851
    %873 = vst [vmem:[#allocation11 + $0x68] sm:$0xff] %v853
    %874 = vst [vmem:[#allocation11 + $0x70] sm:$0xff] %v856
    %875 = vst [vmem:[#allocation11 + $0x78] sm:$0xff] %v858
    // Predicated region
    $region58: #{tpu_custom_call.1} parent=1 // pred_check
      _
    $region59: #{tpu_custom_call.1} parent=1 // pred_check_branch
      %877 = sbr.rel (0) target = $region61
    $region60: #{tpu_custom_call.1} parent=1 // pred_region
      %879 = vsyncadd [#allocation4], 0
      %s880 = sshll.u32 [#allocation11], 4
      %s881 = int_to_ptr.vmem [resolvable:$true] %s880
      %s882 = sshll.u32 %s9, 4
      %s883 = int_to_ptr.hbm [resolvable:$true] %s882
      %888 = dma.vmem_to_hbm [thread:$0]  %s881, 2048, %s883, [#allocation4], 128, 128, 8
    $region61: #{tpu_custom_call.1} parent=1 // pred_fallthru
      _
    // Predicated region
    $region62: #{tpu_custom_call.1} parent=1 // pred_check
      _
    $region63: #{tpu_custom_call.1} parent=1 // pred_check_branch
      %890 = sbr.rel (0) target = $region65
    $region64: #{tpu_custom_call.1} parent=1 // pred_region
      %892 = dma.done [#allocation4], 2048
    $region65: #{tpu_custom_call.1} parent=1 // pred_fallthru
      _
    %893 = vsyncpa [#allocation3], 1
    %894 = vsyncpa [#allocation6], 1
    %895 = vsyncpa [#allocation9], 1
    %896 = vsyncpa [#allocation4], 1

</llo_original>
